<compile_context>
chip_gen: v6e
topology: v6e:2x2x1
jax: 0.10.0
libtpu: 0.0.40
codegen_flags: <defaults>
</compile_context>

<pallas_src>
import numpy as np
import jax
import jax.numpy as jnp
from jax.experimental import pallas as pl
from jax.experimental.pallas import tpu as pltpu


def _round_up(x, m):
    return ((x + m - 1) // m) * m


def _vmem_capacity_bytes():
    try:
        return int(pltpu.get_tpu_info().vmem_capacity_bytes)
    except Exception:
        return 64 << 20  # conservative (v7x per-TC)


def _choose_batch_tile(batch, vmem_cap):
    # Prefer >=2 batch tiles so the "parallel" grid axis feeds both TCs on
    # v7x; allow 512-row tiles only where VMEM is plentiful (v5e/v6e 128 MiB).
    candidates = (512, 256) if vmem_cap >= (100 << 20) else (256,)
    for tb in candidates:
        if batch % tb == 0 and batch // tb >= 2:
            return tb
    if batch >= 128:
        return 128            # batch is padded up to a multiple of 128
    return max(8, _round_up(batch, 8))


def _build_kernel(one_minus_alpha, T, Tc, has_input, has_noise, low_rank,
                  matmul_dtype):
    matmul_dtype = jnp.dtype(matmul_dtype)
    cast_for_mxu = matmul_dtype != jnp.dtype(jnp.float32)
    tail = T % Tc

    def kernel(*refs):
        # refs = (x0, weights..., [I], [noise], out, x_carry)
        idx = 0
        x0_ref = refs[idx]; idx += 1
        if low_rank:
            v_ref = refs[idx]
            ut_ref = refs[idx + 1]
            idx += 2
        else:
            w_ref = refs[idx]; idx += 1
        if has_input:
            i_ref = refs[idx]; idx += 1
        else:
            i_ref = None
        if has_noise:
            n_ref = refs[idx]; idx += 1
        else:
            n_ref = None
        o_ref = refs[idx]
        x_carry = refs[idx + 1]

        chunk = pl.program_id(1)

        # Load the initial state into the f32 carry once per batch tile.
        @pl.when(chunk == 0)
        def _init():
            x_carry[...] = x0_ref[...]

        def one_step(lt, x):
            h = jnp.tanh(x)                          # EUP
            if cast_for_mxu:
                h = h.astype(matmul_dtype)
            if low_rank:
                # Two lane-dense MXU passes; alpha/N folded into V_eff.
                p = jnp.dot(h, v_ref[...], preferred_element_type=jnp.float32)
                if cast_for_mxu:
                    p = p.astype(matmul_dtype)
                r = jnp.dot(p, ut_ref[...], preferred_element_type=jnp.float32)
            else:
                # Single lane-dense MXU pass; W_eff = alpha*(V@U.T)/N folded
                # once in the wrapper.
                r = jnp.dot(h, w_ref[...], preferred_element_type=jnp.float32)
            x_new = one_minus_alpha * x + r          # alpha folded into r/I/n
            if has_input:
                x_new = x_new + i_ref[...]
            if has_noise:
                nv = n_ref[lt]
                if nv.dtype != jnp.float32:
                    nv = nv.astype(jnp.float32)
                x_new = x_new + nv
            return x_new

        # Fully-unrolled Tc-step chunk (amortizes per-grid-step overhead and
        # gives the scheduler a window to overlap EUP/VPU with MXU drains).
        x = x_carry[...]
        for lt in range(Tc):
            x_new = one_step(lt, x)
            if tail and lt >= tail:
                # Only the final chunk can run past T; discard those steps.
                x = jnp.where(chunk * Tc + lt < T, x_new, x)
            else:
                x = x_new
        x_carry[...] = x

        @pl.when(chunk == pl.num_programs(1) - 1)
        def _writeback():
            xv = x_carry[...]
            o_ref[...] = xv if xv.dtype == o_ref.dtype else xv.astype(o_ref.dtype)

    return kernel


class EmptyEncoderRNNPallas:
    """Pallas TPU port of `empty_encoder_rnn` (forward pass only)."""

    def __init__(self, tau, delta_t, embedding_dim, noise_sigma=0.0,
                 matmul_dtype=jnp.float32, use_low_rank=None,
                 max_time_chunk=8):
        self.alpha = float(delta_t) / float(tau)
        # Same constraint as the PyTorch module's __init__.
        assert 0.0 < self.alpha < 1.0
        self.embedding_dim = int(embedding_dim)
        self.noise_sigma = float(noise_sigma)
        self.matmul_dtype = jnp.dtype(matmul_dtype)
        self.use_low_rank = use_low_rank       # None = auto (2*K_pad < N)
        self.max_time_chunk = int(max_time_chunk)

    # --- public API -------------------------------------------------------

    def step(self, U, V, x, I=None, noise=None):
        """Exactly one application of the module's forward()."""
        return self.rollout(U, V, x, I=I, noise=noise, num_steps=1)

    def rollout(self, U, V, x, I=None, noise=None, num_steps=1,
                noise_dtype=None, max_time_chunk=None):
        """Apply the RNN step `num_steps` times in ONE fused pallas_call.

        I     : optional (B, N) external input, constant across steps.
        noise : optional additive noise; (B, N) is held constant across steps
                (folded into the I stream, no per-step DMA) or (T, B, N) for
                per-step noise (e.g. randn * sigma drawn in the wrapper).
        noise_dtype : optional storage dtype for the per-step noise stream
                (e.g. jnp.bfloat16 to halve its HBM traffic).
        """
        alpha = self.alpha
        N = self.embedding_dim

        x = jnp.asarray(x)
        out_dtype = x.dtype
        x32 = x.astype(jnp.float32)
        B, Nx = x.shape
        assert Nx == N
        T = int(num_steps)
        assert T >= 1

        U = jnp.asarray(U, jnp.float32)
        V = jnp.asarray(V, jnp.float32)
        K = U.shape[1]
        assert U.shape == (N, K) and V.shape == (N, K)

        # ---- constant additive term (I and/or constant 2-D noise) ---------
        const_add = None
        if I is not None:
            const_add = jnp.asarray(I, jnp.float32)
            assert const_add.shape == (B, N)

        noise_seq = None
        if noise is not None:
            noise = jnp.asarray(noise)
            if not jnp.issubdtype(noise.dtype, jnp.floating):
                noise = noise.astype(jnp.float32)
            if noise.ndim == 2:
                # Constant across steps -> behaves exactly like I.
                assert noise.shape == (B, N)
                n2 = noise.astype(jnp.float32)
                const_add = n2 if const_add is None else const_add + n2
            else:
                assert noise.shape == (T, B, N)
                noise_seq = noise * alpha          # fold alpha once
                if noise_dtype is not None:
                    noise_seq = noise_seq.astype(noise_dtype)

        has_input = const_add is not None
        has_noise = noise_seq is not None
        if has_input:
            const_add = const_add * alpha          # fold alpha once

        # ---- weights: fold alpha / embedding_dim once ----------------------
        scale = alpha / float(N)
        K_pad = max(128, _round_up(K, 128))
        low_rank = self.use_low_rank
        if low_rank is None:
            low_rank = (2 * K_pad) < N             # FLOP + residency win
        w_dtype = self.matmul_dtype
        w_item = np.dtype(w_dtype).itemsize
        if low_rank:
            V_eff = jnp.zeros((N, K_pad), jnp.float32)
            V_eff = V_eff.at[:, :K].set(V * scale).astype(w_dtype)
            Ut_eff = jnp.zeros((K_pad, N), jnp.float32)
            Ut_eff = Ut_eff.at[:K, :].set(U.T).astype(w_dtype)
            weight_args = [V_eff, Ut_eff]
            w_bytes = 2 * N * K_pad * w_item
        else:
            W_eff = ((V @ U.T) * scale).astype(w_dtype)
            weight_args = [W_eff]
            w_bytes = N * N * w_item

        # ---- batch tiling (pad ragged batches, prefer >=2 tiles) ----------
        vmem_cap = _vmem_capacity_bytes()
        tb = _choose_batch_tile(B, vmem_cap)
        B_pad = _round_up(B, tb)
        if B_pad != B:
            pad_b = B_pad - B
            x32 = jnp.pad(x32, ((0, pad_b), (0, 0)))
            if has_input:
                const_add = jnp.pad(const_add, ((0, pad_b), (0, 0)))

        # ---- time chunking -------------------------------------------------
        tc_cap = self.max_time_chunk if max_time_chunk is None else int(max_time_chunk)
        Tc = max(1, min(T, tc_cap))
        noise_item = np.dtype(noise_seq.dtype).itemsize if has_noise else 4
        if has_noise:
            # Keep the double-buffered (Tc,tb,N) noise block within ~1/4 VMEM.
            per_step = 2 * tb * N * noise_item
            budget = max(vmem_cap // 4, 4 << 20)
            Tc = max(1, min(Tc, budget // per_step))
        num_chunks = -(-T // Tc)
        T_pad = num_chunks * Tc
        if has_noise and (T_pad != T or B_pad != B):
            noise_seq = jnp.pad(noise_seq,
                                ((0, T_pad - T), (0, B_pad - B), (0, 0)))

        grid = (B_pad // tb, num_chunks)

        # ---- specs / args ---------------------------------------------------
        in_specs = [pl.BlockSpec((tb, N), lambda b, c: (b, 0))]   # x0
        args = [x32]
        if low_rank:
            in_specs += [
                pl.BlockSpec((N, K_pad), lambda b, c: (0, 0),
                             pipeline_mode=pl.Buffered(1)),
                pl.BlockSpec((K_pad, N), lambda b, c: (0, 0),
                             pipeline_mode=pl.Buffered(1)),
            ]
        else:
            in_specs.append(pl.BlockSpec((N, N), lambda b, c: (0, 0),
                                         pipeline_mode=pl.Buffered(1)))
        args += weight_args
        if has_input:
            in_specs.append(pl.BlockSpec((tb, N), lambda b, c: (b, 0)))
            args.append(const_add)
        if has_noise:
            in_specs.append(pl.BlockSpec((Tc, tb, N), lambda b, c: (c, b, 0)))
            args.append(noise_seq)

        # ---- VMEM accounting & cost hint ------------------------------------
        f32 = 4
        out_item = np.dtype(out_dtype).itemsize
        tile_x = tb * N * f32
        need = w_bytes                          # Buffered(1) -> single copy
        need += 2 * tile_x                      # x0 (double buffered)
        need += 2 * tb * N * out_item           # out (double buffered)
        if has_input:
            need += 2 * tile_x
        if has_noise:
            need += 2 * Tc * tb * N * noise_item
        need += tile_x                          # f32 carry scratch
        vmem_limit = int(min(max(need + (4 << 20), 32 << 20), vmem_cap))

        mm_flops = (4 * B_pad * N * K_pad if low_rank else 2 * B_pad * N * N) * T
        flops = mm_flops + 4 * B_pad * N * T
        bytes_accessed = (B_pad * N * f32 + B_pad * N * out_item + w_bytes
                          + (B_pad * N * f32 if has_input else 0)
                          + (T_pad * B_pad * N * noise_item if has_noise else 0))
        cost = pl.CostEstimate(flops=int(flops),
                               transcendentals=int(B_pad * N * T),
                               bytes_accessed=int(bytes_accessed))

        kernel = _build_kernel(1.0 - alpha, T, Tc, has_input, has_noise,
                               low_rank, w_dtype)

        out = pl.pallas_call(
            kernel,
            out_shape=jax.ShapeDtypeStruct((B_pad, N), out_dtype),
            grid=grid,
            in_specs=in_specs,
            out_specs=pl.BlockSpec((tb, N), lambda b, c: (b, 0)),
            scratch_shapes=[pltpu.VMEM((tb, N), jnp.float32)],
            compiler_params=pltpu.CompilerParams(
                dimension_semantics=("parallel", "arbitrary"),
                vmem_limit_bytes=vmem_limit),
            cost_estimate=cost,
        )(*args)

        return out[:B] if B_pad != B else out


# --- pure-JAX reference (matches the PyTorch forward) -----------------------

def reference_rollout(U, V, x, I, noise, alpha, embedding_dim, num_steps):
    x = jnp.asarray(x, jnp.float32)
    I_eff = jnp.zeros_like(x) if I is None else jnp.asarray(I, jnp.float32)
    for t in range(num_steps):
        if noise is None:
            n_t = jnp.zeros_like(x)
        elif noise.ndim == 2:
            n_t = jnp.asarray(noise, jnp.float32)
        else:
            n_t = jnp.asarray(noise[t], jnp.float32)
        x = (1.0 - alpha) * x + alpha * (
            (jnp.tanh(x) @ V @ U.T) / embedding_dim + I_eff + n_t)
    return x


if __name__ == "__main__":
    B, N, K = 8, 128, 32          # batch, state/embedding dim, low-rank dim
    tau, delta_t, noise_sigma = 10.0, 1.0, 0.1
    T = 6                          # fused rollout length

    key = jax.random.PRNGKey(0)
    k_u, k_v, k_x, k_i, k_n = jax.random.split(key, 5)
    U = jax.random.normal(k_u, (N, K), dtype=jnp.float32) / jnp.sqrt(N)
    V = jax.random.normal(k_v, (N, K), dtype=jnp.float32) / jnp.sqrt(N)
    x = jax.random.normal(k_x, (B, N), dtype=jnp.float32)
    I = jax.random.normal(k_i, (B, N), dtype=jnp.float32)

    rnn = EmptyEncoderRNNPallas(tau, delta_t, embedding_dim=N,
                                noise_sigma=noise_sigma)
    alpha = rnn.alpha
    tol = dict(atol=1e-4, rtol=1e-4)

    # 1) single step, eval path with external input I (no noise stream)
    out1 = jax.block_until_ready(rnn.step(U, V, x, I))
    ref1 = reference_rollout(U, V, x, I, None, alpha, N, 1)
    assert out1.shape == x.shape and out1.dtype == x.dtype
    assert jnp.allclose(out1, ref1, **tol), "step(I) mismatch"

    # 2) single step, I=None (specialized kernel: no I / noise DMA streams)
    out2 = jax.block_until_ready(rnn.step(U, V, x))
    ref2 = reference_rollout(U, V, x, None, None, alpha, N, 1)
    assert jnp.allclose(out2, ref2, **tol), "step() mismatch"

    # 3) fused T-step rollout with I + per-step noise (single time chunk)
    noiseT = jax.random.normal(k_n, (T, B, N), jnp.float32) * noise_sigma
    out3 = jax.block_until_ready(rnn.rollout(U, V, x, I, noise=noiseT,
                                             num_steps=T))
    ref3 = reference_rollout(U, V, x, I, noiseT, alpha, N, T)
    assert jnp.allclose(out3, ref3, **tol), "rollout mismatch"

    # 4) ragged time chunking (T=7, Tc=4 -> masked tail) + ragged batch (B=5)
    T2, B2 = 7, 5
    x5, I5 = x[:B2], I[:B2]
    noise7 = jax.random.normal(k_n, (T2, B2, N), jnp.float32) * noise_sigma
    rnn_chunk = EmptyEncoderRNNPallas(tau, delta_t, N, noise_sigma,
                                      max_time_chunk=4)
    out4 = jax.block_until_ready(rnn_chunk.rollout(U, V, x5, I5, noise=noise7,
                                                   num_steps=T2))
    ref4 = reference_rollout(U, V, x5, I5, noise7, alpha, N, T2)
    assert out4.shape == (B2, N)
    assert jnp.allclose(out4, ref4, **tol), "ragged rollout mismatch"

    # 5) constant 2-D noise (folded into the I stream, no per-step DMA)
    noiseC = jax.random.normal(k_n, (B, N), jnp.float32) * noise_sigma
    out5 = jax.block_until_ready(rnn.rollout(U, V, x, I, noise=noiseC,
                                             num_steps=3))
    ref5 = reference_rollout(U, V, x, I, noiseC, alpha, N, 3)
    assert jnp.allclose(out5, ref5, **tol), "constant-noise mismatch"

    # 6) forced low-rank path (K=32 zero-padded to 128 lanes, two MXU passes)
    rnn_lr = EmptyEncoderRNNPallas(tau, delta_t, N, noise_sigma,
                                   use_low_rank=True)
    out6 = jax.block_until_ready(rnn_lr.rollout(U, V, x, I, num_steps=T))
    ref6 = reference_rollout(U, V, x, I, None, alpha, N, T)
    assert jnp.allclose(out6, ref6, **tol), "low-rank mismatch"

    # 7) bf16 MXU path + bf16 noise stream (f32 accumulation and blend)
    rnn_bf16 = EmptyEncoderRNNPallas(tau, delta_t, N, noise_sigma,
                                     matmul_dtype=jnp.bfloat16)
    out7 = jax.block_until_ready(rnn_bf16.rollout(U, V, x, I, noise=noiseT,
                                                  num_steps=T,
                                                  noise_dtype=jnp.bfloat16))
    assert jnp.allclose(out7, ref3, atol=5e-2, rtol=5e-2), "bf16 mismatch"

    print("KERNEL_OK")
</pallas_src>

<mosaic_0001>
module attributes {stable_mosaic.version = 11 : i64} {
  func.func @kernel(%arg0: i32, %arg1: i32, %arg2: memref<8x128xf32, #tpu.memory_space<vmem>>, %arg3: memref<128x128xf32, #tpu.memory_space<vmem>>, %arg4: memref<8x128xf32, #tpu.memory_space<vmem>>, %arg5: memref<8x128xf32, #tpu.memory_space<vmem>>, %arg6: memref<8x128xf32, #tpu.memory_space<vmem>>) attributes {dimension_semantics = [#tpu.dimension_semantics<parallel>, #tpu.dimension_semantics<arbitrary>], iteration_bounds = array<i64: 1, 1>, scalar_prefetch = 0 : i64, scratch_operands = 1 : i64, tpu.core_type = #tpu.core_type<tc>, window_params = [{transform_indices = @transform_0, window_bounds = array<i64: 8, 128>}, {pipeline_mode = #tpu.pipeline_mode<synchronous>, transform_indices = @transform_1, window_bounds = array<i64: 128, 128>}, {transform_indices = @transform_2, window_bounds = array<i64: 8, 128>}, {transform_indices = @transform_3, window_bounds = array<i64: 8, 128>}]} {
    %c0_i32 = arith.constant 0 : i32
    %0 = arith.cmpi eq, %arg1, %c0_i32 : i32
    %1 = arith.extui %0 : i1 to i32
    %c0_i32_0 = arith.constant 0 : i32
    %2 = arith.cmpi ne, %1, %c0_i32_0 : i32
    scf.if %2 {
      %c0_11 = arith.constant 0 : index
      %c0_12 = arith.constant 0 : index
      %16 = vector.load %arg2[%c0_11, %c0_12] : memref<8x128xf32, #tpu.memory_space<vmem>>, vector<8x128xf32>
      %c0_13 = arith.constant 0 : index
      %c0_14 = arith.constant 0 : index
      %17 = vector.load %arg6[%c0_13, %c0_14] : memref<8x128xf32, #tpu.memory_space<vmem>>, vector<8x128xf32>
      tpu.vector_store %arg6[%c0_13, %c0_14], %16 {strides = array<i32>} : memref<8x128xf32, #tpu.memory_space<vmem>>, vector<8x128xf32>,
    } else {
    }
    %c0 = arith.constant 0 : index
    %c0_1 = arith.constant 0 : index
    %3 = vector.load %arg6[%c0, %c0_1] : memref<8x128xf32, #tpu.memory_space<vmem>>, vector<8x128xf32>
    %4 = math.tanh %3 : vector<8x128xf32>
    %c0_2 = arith.constant 0 : index
    %c0_3 = arith.constant 0 : index
    %5 = vector.load %arg3[%c0_2, %c0_3] : memref<128x128xf32, #tpu.memory_space<vmem>>, vector<128x128xf32>
    %cst = arith.constant dense<0.000000e+00> : vector<8x128xf32>
    %6 = tpu.matmul %4, %5, %cst {dimension_numbers = #tpu.dot_dimension_numbers<[1], [0], [0], [1], [0, 0, 1, 1], [], []>} : vector<8x128xf32>, vector<128x128xf32>, vector<8x128xf32> -> vector<8x128xf32>
    %cst_4 = arith.constant 0.899999976 : f32
    %7 = vector.broadcast %cst_4 : f32 to vector<8x128xf32>
    %8 = arith.mulf %7, %3 : vector<8x128xf32>
    %9 = arith.addf %8, %6 : vector<8x128xf32>
    %c0_5 = arith.constant 0 : index
    %c0_6 = arith.constant 0 : index
    %10 = vector.load %arg4[%c0_5, %c0_6] : memref<8x128xf32, #tpu.memory_space<vmem>>, vector<8x128xf32>
    %11 = arith.addf %9, %10 : vector<8x128xf32>
    %c0_7 = arith.constant 0 : index
    %c0_8 = arith.constant 0 : index
    %12 = vector.load %arg6[%c0_7, %c0_8] : memref<8x128xf32, #tpu.memory_space<vmem>>, vector<8x128xf32>
    tpu.vector_store %arg6[%c0_7, %c0_8], %11 {strides = array<i32>} : memref<8x128xf32, #tpu.memory_space<vmem>>, vector<8x128xf32>,
    %c0_i32_9 = arith.constant 0 : i32
    %13 = arith.cmpi eq, %arg1, %c0_i32_9 : i32
    %14 = arith.extui %13 : i1 to i32
    %c0_i32_10 = arith.constant 0 : i32
    %15 = arith.cmpi ne, %14, %c0_i32_10 : i32
    scf.if %15 {
      %c0_11 = arith.constant 0 : index
      %c0_12 = arith.constant 0 : index
      %16 = vector.load %arg6[%c0_11, %c0_12] : memref<8x128xf32, #tpu.memory_space<vmem>>, vector<8x128xf32>
      %c0_13 = arith.constant 0 : index
      %c0_14 = arith.constant 0 : index
      %17 = vector.load %arg5[%c0_13, %c0_14] : memref<8x128xf32, #tpu.memory_space<vmem>>, vector<8x128xf32>
      tpu.vector_store %arg5[%c0_13, %c0_14], %16 {strides = array<i32>} : memref<8x128xf32, #tpu.memory_space<vmem>>, vector<8x128xf32>,
    } else {
    }
    return
  }
  func.func @transform_0(%arg0: i32, %arg1: i32) -> (i32, i32) {
    %c0_i32 = arith.constant 0 : i32
    %c0_i32_0 = arith.constant 0 : i32
    return %arg0, %c0_i32 : i32, i32
  }
  func.func @transform_1(%arg0: i32, %arg1: i32) -> (i32, i32) {
    %c0_i32 = arith.constant 0 : i32
    %c0_i32_0 = arith.constant 0 : i32
    %c0_i32_1 = arith.constant 0 : i32
    return %c0_i32, %c0_i32_0 : i32, i32
  }
  func.func @transform_2(%arg0: i32, %arg1: i32) -> (i32, i32) {
    %c0_i32 = arith.constant 0 : i32
    %c0_i32_0 = arith.constant 0 : i32
    return %arg0, %c0_i32 : i32, i32
  }
  func.func @transform_3(%arg0: i32, %arg1: i32) -> (i32, i32) {
    %c0_i32 = arith.constant 0 : i32
    %c0_i32_0 = arith.constant 0 : i32
    return %arg0, %c0_i32 : i32, i32
  }
}

</mosaic_0001>

<llo_original>
// kernel: tpu_custom_call.1
$region0: #{tpu_custom_call.1}
  #allocation0 [shape = 'u32[]', space=smem, size = 0x4, offset = 0x4, fixed_abs, tag = 'smem constant byte address 0x4 - core index']
  #allocation1 [shape = 'u32[144,128]{1,0:T(1,128)}', space=vmem, size = 0x12000, scoped, tag = 'internal scratch']
  #allocation2 [shape = 'f32[8,128]{1,0:T(8,128)}', space=vmem, size = 0x1000, scoped, tag = 'scratch operand']
  %s0 = inlined_call_operand.hbm [shape: f32[8,128], index: 0, kind: input, shape index: {}]
  %s1 = inlined_call_operand.hbm [shape: f32[128,128], index: 1, kind: input, shape index: {}]
  %s2 = inlined_call_operand.hbm [shape: f32[8,128], index: 2, kind: input, shape index: {}]
  %s3 = inlined_call_operand.hbm [shape: f32[8,128], index: 3, kind: output, shape index: {}]
  %s4 = sld [smem:[#allocation0]]
  $region42: #{tpu_custom_call.1} parent=0
    _
  %s6 = ssub.s32 1, %s4
  %s7 = scalar_select 0, %s6, %s4
  $region1: #{tpu_custom_call.1} parent=0
    #allocation3 [shape = 'u8[4096]{0}', space=vmem, size = 0x1000, scoped, tag = 'input window, operand 0, single buffered']
    #allocation4 [shape = 's32[1]{0}', space=sflag, size = 0x4, scoped, tag = 'scoped memory for tpu_custom_call.1']
    #allocation5 [shape = 's32[1]{0}', space=sflag, size = 0x4, scoped, tag = 'scoped memory for tpu_custom_call.1']
    #allocation6 [shape = 'u8[65536]{0}', space=vmem, size = 0x10000, scoped, tag = 'input window, operand 1, single buffered']
    #allocation7 [shape = 's32[1]{0}', space=sflag, size = 0x4, scoped, tag = 'scoped memory for tpu_custom_call.1']
    #allocation8 [shape = 'u8[4096]{0}', space=vmem, size = 0x1000, scoped, tag = 'input window, operand 2, single buffered']
    #allocation9 [shape = 'u8[4096]{0}', space=vmem, size = 0x1000, scoped, tag = 'output window, operand 0, single buffered']
    %8 = vsyncpa [#allocation4], 0
    %9 = vsyncpa [#allocation7], 0
    %10 = vsyncpa [#allocation5], 0
    // Predicated region
    $region2: #{tpu_custom_call.1} parent=1 // pred_check
      _
    $region3: #{tpu_custom_call.1} parent=1 // pred_check_branch
      %12 = sbr.rel (0) target = $region5
    $region4: #{tpu_custom_call.1} parent=1 // pred_region
      %s14 = ssub.s32 128, 128
      %15 = vsyncadd [#allocation4], %s14
      %s17 = sshll.u32 [#allocation3], 4
      %s18 = int_to_ptr.vmem [resolvable:$true] %s17
      %20 = dma.hbm_to_vmem [thread:$0]  %s0, 128, %s18, [#allocation4]
    $region5: #{tpu_custom_call.1} parent=1 // pred_fallthru
      _
    // Predicated region
    $region6: #{tpu_custom_call.1} parent=1 // pred_check
      _
    $region7: #{tpu_custom_call.1} parent=1 // pred_check_branch
      %22 = sbr.rel (0) target = $region9
    $region8: #{tpu_custom_call.1} parent=1 // pred_region
      %s24 = ssub.s32 2048, 2048
      %25 = vsyncadd [#allocation7], %s24
      %s26 = sshll.u32 [#allocation6], 4
      %s27 = int_to_ptr.vmem [resolvable:$true] %s26
      %32 = dma.hbm_to_vmem [thread:$0]  %s1, 2048, %s27, [#allocation7], 128, 128, 8
    $region9: #{tpu_custom_call.1} parent=1 // pred_fallthru
      _
    // Predicated region
    $region10: #{tpu_custom_call.1} parent=1 // pred_check
      _
    $region11: #{tpu_custom_call.1} parent=1 // pred_check_branch
      %34 = sbr.rel (0) target = $region13
    $region12: #{tpu_custom_call.1} parent=1 // pred_region
      %s36 = ssub.s32 128, 128
      %37 = vsyncadd [#allocation7], %s36
      %s39 = sshll.u32 [#allocation8], 4
      %s40 = int_to_ptr.vmem [resolvable:$true] %s39
      %42 = dma.hbm_to_vmem [thread:$0]  %s2, 128, %s40, [#allocation7]
    $region13: #{tpu_custom_call.1} parent=1 // pred_fallthru
      _
    // Predicated region
    $region14: #{tpu_custom_call.1} parent=1 // pred_check
      _
    $region15: #{tpu_custom_call.1} parent=1 // pred_check_branch
      %44 = sbr.rel (0) target = $region17
    $region16: #{tpu_custom_call.1} parent=1 // pred_region
      %45 = dma.done [#allocation4], 128
    $region17: #{tpu_custom_call.1} parent=1 // pred_fallthru
      _
    // Predicated region
    $region18: #{tpu_custom_call.1} parent=1 // pred_check
      _
    $region19: #{tpu_custom_call.1} parent=1 // pred_check_branch
      %47 = sbr.rel (0) target = $region21
    $region20: #{tpu_custom_call.1} parent=1 // pred_region
      %48 = dma.done [#allocation7], 2048
    $region21: #{tpu_custom_call.1} parent=1 // pred_fallthru
      _
    // Predicated region
    $region22: #{tpu_custom_call.1} parent=1 // pred_check
      _
    $region23: #{tpu_custom_call.1} parent=1 // pred_check_branch
      %50 = sbr.rel (0) target = $region25
    $region24: #{tpu_custom_call.1} parent=1 // pred_region
      %51 = dma.done [#allocation7], 128
    $region25: #{tpu_custom_call.1} parent=1 // pred_fallthru
      _
    %p52 = scmp.eq.s32.totalorder 0, 0
    // Predicated region
    $region26: #{tpu_custom_call.1} parent=1 // pred_check
      %p53 = pneg %p52
    $region27: #{tpu_custom_call.1} parent=1 // pred_check_branch
      %55 = sbr.rel (%p53) target = $region29
    $region28: #{tpu_custom_call.1} parent=1 // pred_region
      %v56 = vld [vmem:[#allocation3] sm:$0xff]
      %57 = vst [vmem:[#allocation2] sm:$0xff] %v56
    $region29: #{tpu_custom_call.1} parent=1 // pred_fallthru
      _
    %v58 = vld [vmem:[#allocation2] sm:$0xff]
    %v59 = vtanh.pop %v58
    %v60 = vld [vmem:[#allocation6] sm:$0xff]
    %v61 = vld [vmem:[#allocation6 + $0x8] sm:$0xff]
    %v62 = vld [vmem:[#allocation6 + $0x10] sm:$0xff]
    %v63 = vld [vmem:[#allocation6 + $0x18] sm:$0xff]
    %v64 = vld [vmem:[#allocation6 + $0x20] sm:$0xff]
    %v65 = vld [vmem:[#allocation6 + $0x28] sm:$0xff]
    %v66 = vld [vmem:[#allocation6 + $0x30] sm:$0xff]
    %v67 = vld [vmem:[#allocation6 + $0x38] sm:$0xff]
    %v68 = vld [vmem:[#allocation6 + $0x40] sm:$0xff]
    %v69 = vld [vmem:[#allocation6 + $0x48] sm:$0xff]
    %v70 = vld [vmem:[#allocation6 + $0x50] sm:$0xff]
    %v71 = vld [vmem:[#allocation6 + $0x58] sm:$0xff]
    %v72 = vld [vmem:[#allocation6 + $0x60] sm:$0xff]
    %v73 = vld [vmem:[#allocation6 + $0x68] sm:$0xff]
    %v74 = vld [vmem:[#allocation6 + $0x70] sm:$0xff]
    %v75 = vld [vmem:[#allocation6 + $0x78] sm:$0xff]
    %76 = vmatprep.subr.mxu0 0.0
    %77 = vmatpush1.msra.mxu0 %v75
    %78 = vmatprep.subr.mxu0 0.0
    %79 = vmatpush1.msra.mxu0 %v74
    %80 = vmatprep.subr.mxu0 0.0
    %81 = vmatpush1.msra.mxu0 %v73
    %82 = vmatprep.subr.mxu0 0.0
    %83 = vmatpush1.msra.mxu0 %v72
    %84 = vmatprep.subr.mxu0 0.0
    %85 = vmatpush1.msra.mxu0 %v71
    %86 = vmatprep.subr.mxu0 0.0
    %87 = vmatpush1.msra.mxu0 %v70
    %88 = vmatprep.subr.mxu0 0.0
    %89 = vmatpush1.msra.mxu0 %v69
    %90 = vmatprep.subr.mxu0 0.0
    %91 = vmatpush1.msra.mxu0 %v68
    %92 = vmatprep.subr.mxu0 0.0
    %93 = vmatpush1.msra.mxu0 %v67
    %94 = vmatprep.subr.mxu0 0.0
    %95 = vmatpush1.msra.mxu0 %v66
    %96 = vmatprep.subr.mxu0 0.0
    %97 = vmatpush1.msra.mxu0 %v65
    %98 = vmatprep.subr.mxu0 0.0
    %99 = vmatpush1.msra.mxu0 %v64
    %100 = vmatprep.subr.mxu0 0.0
    %101 = vmatpush1.msra.mxu0 %v63
    %102 = vmatprep.subr.mxu0 0.0
    %103 = vmatpush1.msra.mxu0 %v62
    %104 = vmatprep.subr.mxu0 0.0
    %105 = vmatpush1.msra.mxu0 %v61
    %106 = vmatprep.subr.mxu0 0.0
    %107 = vmatpush1.msra.mxu0 %v60
    %108 = vmatprep.subr.mxu0 0.0
    %109 = vmatpush2.msra.mxu0 0.0
    %110 = vmatprep.subr.mxu0 0.0
    %111 = vmatpush2.msra.mxu0 0.0
    %112 = vmatprep.subr.mxu0 0.0
    %113 = vmatpush2.msra.mxu0 0.0
    %114 = vmatprep.subr.mxu0 0.0
    %115 = vmatpush2.msra.mxu0 0.0
    %116 = vmatprep.subr.mxu0 0.0
    %117 = vmatpush2.msra.mxu0 0.0
    %118 = vmatprep.subr.mxu0 0.0
    %119 = vmatpush2.msra.mxu0 0.0
    %120 = vmatprep.subr.mxu0 0.0
    %121 = vmatpush2.msra.mxu0 0.0
    %122 = vmatprep.subr.mxu0 0.0
    %123 = vmatpush2.msra.mxu0 0.0
    %124 = vmatprep.subr.mxu0 0.0
    %125 = vmatpush2.msra.mxu0 0.0
    %126 = vmatprep.subr.mxu0 0.0
    %127 = vmatpush2.msra.mxu0 0.0
    %128 = vmatprep.subr.mxu0 0.0
    %129 = vmatpush2.msra.mxu0 0.0
    %130 = vmatprep.subr.mxu0 0.0
    %131 = vmatpush2.msra.mxu0 0.0
    %132 = vmatprep.subr.mxu0 0.0
    %133 = vmatpush2.msra.mxu0 0.0
    %134 = vmatprep.subr.mxu0 0.0
    %135 = vmatpush2.msra.mxu0 0.0
    %136 = vmatprep.subr.mxu0 0.0
    %137 = vmatpush2.msra.mxu0 0.0
    %138 = vmatprep.subr.mxu0 0.0
    %139 = vmatpush2.msra.mxu0 0.0
    %140 = vmatprep.mubr.f32.mxu0 0.0
    %141 = vmatmul.mubr.f32.gmra.mxu0 %v59
    %v142 = vpop.f32.mrf.mxu0
    %v143 = vadd.f32 0.0, %v142
    %v144 = vpop.f32.mrf.mxu0
    %145 = vdwg.mxu0
    %v146 = vmul.f32 %v58, 0.9
    %v147 = vadd.f32 %v146, %v143
    %v148 = vld [vmem:[#allocation8] sm:$0xff]
    %v149 = vadd.f32 %v147, %v148
    %150 = vst [vmem:[#allocation2] sm:$0xff] %v149
    // Predicated region
    $region30: #{tpu_custom_call.1} parent=1 // pred_check
      %p151 = pneg %p52
    $region31: #{tpu_custom_call.1} parent=1 // pred_check_branch
      %153 = sbr.rel (%p151) target = $region33
    $region32: #{tpu_custom_call.1} parent=1 // pred_region
      %v154 = vld [vmem:[#allocation2] sm:$0xff]
      %155 = vst [vmem:[#allocation9] sm:$0xff] %v154
    $region33: #{tpu_custom_call.1} parent=1 // pred_fallthru
      _
    // Predicated region
    $region34: #{tpu_custom_call.1} parent=1 // pred_check
      _
    $region35: #{tpu_custom_call.1} parent=1 // pred_check_branch
      %157 = sbr.rel (0) target = $region37
    $region36: #{tpu_custom_call.1} parent=1 // pred_region
      %s159 = ssub.s32 128, 128
      %160 = vsyncadd [#allocation5], %s159
      %s162 = sshll.u32 [#allocation9], 4
      %s163 = int_to_ptr.vmem [resolvable:$true] %s162
      %165 = dma.vmem_to_hbm [thread:$0]  %s163, 128, %s3, [#allocation5]
    $region37: #{tpu_custom_call.1} parent=1 // pred_fallthru
      _
    // Predicated region
    $region38: #{tpu_custom_call.1} parent=1 // pred_check
      _
    $region39: #{tpu_custom_call.1} parent=1 // pred_check_branch
      %167 = sbr.rel (0) target = $region41
    $region40: #{tpu_custom_call.1} parent=1 // pred_region
      %168 = dma.done [#allocation5], 128
    $region41: #{tpu_custom_call.1} parent=1 // pred_fallthru
      _
    %169 = vsyncpa [#allocation4], 1
    %170 = vsyncpa [#allocation7], 1
    %171 = vsyncpa [#allocation5], 1

</llo_original>
